<compile_context>
chip_gen: v6e
topology: v6e:2x2x1
jax: 0.10.0
libtpu: 0.0.40
codegen_flags: <defaults>
</compile_context>

<pallas_src>
import jax
import jax.numpy as jnp
from jax.experimental import pallas as pl
from jax.experimental.pallas import tpu as pltpu


# ----------------------------------------------------------------------------
# Pallas copy kernel (the forward `input.clone()`)
# ----------------------------------------------------------------------------
_LANES = 128          # lane width: keep the last block dim dense (no masked vst)
_ROW_TILE = 2048      # 2048 x 128 f32 = 1 MiB per tile; 2x double-buffered in+out
                      # = 4 MiB VMEM -> safe on v5e (16 MiB scoped), v6e (32 MiB)
                      # and v7x (32 MiB scoped / 64 MiB physical).


def _copy_kernel(x_ref, o_ref):
    o_ref[...] = x_ref[...]


def _pallas_copy_2d(x2d):
    """Copy a [rows, 128] array through VMEM with row-tiled pipelining."""
    rows, lanes = x2d.shape
    # Full-extent block if small, otherwise an (8,128)-aligned row tile.
    tr = rows if rows <= _ROW_TILE else _ROW_TILE
    grid = (pl.cdiv(rows, tr),)
    nbytes = x2d.size * jnp.dtype(x2d.dtype).itemsize
    return pl.pallas_call(
        _copy_kernel,
        out_shape=jax.ShapeDtypeStruct((rows, lanes), x2d.dtype),
        grid_spec=pltpu.PrefetchScalarGridSpec(
            num_scalar_prefetch=0,
            grid=grid,
            in_specs=[pl.BlockSpec((tr, lanes), lambda i: (i, 0))],
            out_specs=pl.BlockSpec((tr, lanes), lambda i: (i, 0)),
        ),
        compiler_params=pltpu.CompilerParams(
            # Row blocks are independent -> megacore-shardable on v7x.
            dimension_semantics=("parallel",),
        ),
        cost_estimate=pl.CostEstimate(
            flops=0, transcendentals=0, bytes_accessed=2 * nbytes),
    )(x2d)


def top_gradient_copy(x):
    """Forward of top_gradient: a fresh copy of `x` (identity values)."""
    n = x.size
    rows = pl.cdiv(n, _LANES)
    padded = rows * _LANES
    flat = x.reshape(-1)
    if padded != n:
        # Pad to a lane-dense [rows, 128] slab; sliced back off below.
        flat = jnp.pad(flat, (0, padded - n))
    y2d = _pallas_copy_2d(flat.reshape(rows, _LANES))
    y = y2d.reshape(-1)
    if padded != n:
        y = y[:n]
    return y.reshape(x.shape)


# ----------------------------------------------------------------------------
# top_gradient autograd function (custom_vjp) + Top_Gradient module equivalent
# ----------------------------------------------------------------------------
@jax.custom_vjp
def _top_gradient(input, dummies):
    return top_gradient_copy(input)


def _top_gradient_fwd(input, dummies):
    out = top_gradient_copy(input)
    # Mirror ctx.save_for_backward(output, *dummies): keep dummies as residuals
    # (only their shapes/dtypes are needed to rebuild the fan-out gradients).
    return out, dummies


def _top_gradient_bwd(dummies, g):
    # grad_input = grad_output; grad_dummy_i = grad_output (same as PyTorch,
    # which assumes dummies share the input's shape).
    grad_dummies = tuple(g.astype(d.dtype) for d in dummies)
    return g, grad_dummies


_top_gradient.defvjp(_top_gradient_fwd, _top_gradient_bwd)


class TopGradient:
    """JAX/Pallas port of Top_Gradient: forward is a Pallas copy of `input`,
    backward routes grad_output to the input and to every dummy."""

    def __call__(self, input, *dummies):
        return _top_gradient(input, tuple(dummies))


# ----------------------------------------------------------------------------
# Demo / self-test
# ----------------------------------------------------------------------------
if __name__ == "__main__":
    key = jax.random.PRNGKey(0)
    kx, kd = jax.random.split(key)

    # Small NCHW input + one same-shaped dummy (the typical Top_Gradient usage).
    B, C, H, W = 2, 4, 16, 16
    x = jax.random.normal(kx, (B, C, H, W), dtype=jnp.float32)
    dummy = jax.random.normal(kd, (B, C, H, W), dtype=jnp.float32)

    mod = TopGradient()
    out = jax.block_until_ready(mod(x, dummy))

    # Forward: must be a value-identical copy of the input.
    assert out.shape == x.shape and out.dtype == x.dtype
    assert jnp.array_equal(out, x)

    # Backward: gradient of sum(output) w.r.t. input AND dummy must both be ones
    # (top_gradient fans grad_output out to every argument).
    gx, gd = jax.grad(lambda a, b: jnp.sum(mod(a, b)), argnums=(0, 1))(x, dummy)
    gx = jax.block_until_ready(gx)
    gd = jax.block_until_ready(gd)
    assert jnp.array_equal(gx, jnp.ones_like(x))
    assert jnp.array_equal(gd, jnp.ones_like(dummy))

    print("KERNEL_OK")
</pallas_src>

<mosaic_0001>
module attributes {stable_mosaic.version = 11 : i64} {
  func.func @_copy_kernel(%arg0: i32, %arg1: memref<16x128xf32, #tpu.memory_space<vmem>>, %arg2: memref<16x128xf32, #tpu.memory_space<vmem>>) attributes {dimension_semantics = [#tpu.dimension_semantics<parallel>], iteration_bounds = array<i64: 1>, scalar_prefetch = 0 : i64, scratch_operands = 0 : i64, tpu.core_type = #tpu.core_type<tc>, window_params = [{transform_indices = @transform_0, window_bounds = array<i64: 16, 128>}, {transform_indices = @transform_1, window_bounds = array<i64: 16, 128>}]} {
    %c0 = arith.constant 0 : index
    %c0_0 = arith.constant 0 : index
    %0 = vector.load %arg1[%c0, %c0_0] : memref<16x128xf32, #tpu.memory_space<vmem>>, vector<16x128xf32>
    %c0_1 = arith.constant 0 : index
    %c0_2 = arith.constant 0 : index
    %1 = vector.load %arg2[%c0_1, %c0_2] : memref<16x128xf32, #tpu.memory_space<vmem>>, vector<16x128xf32>
    tpu.vector_store %arg2[%c0_1, %c0_2], %0 {strides = array<i32>} : memref<16x128xf32, #tpu.memory_space<vmem>>, vector<16x128xf32>,
    return
  }
  func.func @transform_0(%arg0: i32) -> (i32, i32) {
    %c0_i32 = arith.constant 0 : i32
    %c0_i32_0 = arith.constant 0 : i32
    return %arg0, %c0_i32 : i32, i32
  }
  func.func @transform_1(%arg0: i32) -> (i32, i32) {
    %c0_i32 = arith.constant 0 : i32
    %c0_i32_0 = arith.constant 0 : i32
    return %arg0, %c0_i32 : i32, i32
  }
}

</mosaic_0001>

<llo_original>
// kernel: tpu_custom_call.1
$region0: #{tpu_custom_call.1}
  #allocation0 [shape = 'u32[]', space=smem, size = 0x4, offset = 0x4, fixed_abs, tag = 'smem constant byte address 0x4 - core index']
  #allocation1 [shape = 'u32[144,128]{1,0:T(1,128)}', space=vmem, size = 0x12000, scoped, tag = 'internal scratch']
  %s0 = inlined_call_operand.hbm [shape: f32[16,128], index: 0, kind: input, shape index: {}]
  %s1 = inlined_call_operand.hbm [shape: f32[16,128], index: 1, kind: output, shape index: {}]
  %s2 = sld [smem:[#allocation0]]
  $region18: #{tpu_custom_call.1} parent=0
    _
  %s4 = ssub.s32 1, %s2
  %s5 = scalar_select 0, %s4, %s2
  $region1: #{tpu_custom_call.1} parent=0
    #allocation2 [shape = 'u8[8192]{0}', space=vmem, size = 0x2000, scoped, tag = 'input window, operand 0, single buffered']
    #allocation3 [shape = 's32[1]{0}', space=sflag, size = 0x4, scoped, tag = 'scoped memory for tpu_custom_call.1']
    #allocation4 [shape = 's32[1]{0}', space=sflag, size = 0x4, scoped, tag = 'scoped memory for tpu_custom_call.1']
    #allocation5 [shape = 'u8[8192]{0}', space=vmem, size = 0x2000, scoped, tag = 'output window, operand 0, single buffered']
    %6 = vsyncpa [#allocation3], 0
    %7 = vsyncpa [#allocation4], 0
    // Predicated region
    $region2: #{tpu_custom_call.1} parent=1 // pred_check
      _
    $region3: #{tpu_custom_call.1} parent=1 // pred_check_branch
      %9 = sbr.rel (0) target = $region5
    $region4: #{tpu_custom_call.1} parent=1 // pred_region
      %s11 = ssub.s32 256, 256
      %12 = vsyncadd [#allocation3], %s11
      %s13 = sshll.u32 [#allocation2], 4
      %s14 = int_to_ptr.vmem [resolvable:$true] %s13
      %19 = dma.hbm_to_vmem [thread:$0]  %s0, 256, %s14, [#allocation3], 128, 128, 8
    $region5: #{tpu_custom_call.1} parent=1 // pred_fallthru
      _
    // Predicated region
    $region6: #{tpu_custom_call.1} parent=1 // pred_check
      _
    $region7: #{tpu_custom_call.1} parent=1 // pred_check_branch
      %21 = sbr.rel (0) target = $region9
    $region8: #{tpu_custom_call.1} parent=1 // pred_region
      %22 = dma.done [#allocation3], 256
    $region9: #{tpu_custom_call.1} parent=1 // pred_fallthru
      _
    %v23 = vld [vmem:[#allocation2] sm:$0xff]
    %v24 = vld [vmem:[#allocation2 + $0x8] sm:$0xff]
    %25 = vst [vmem:[#allocation5] sm:$0xff] %v23
    %26 = vst [vmem:[#allocation5 + $0x8] sm:$0xff] %v24
    // Predicated region
    $region10: #{tpu_custom_call.1} parent=1 // pred_check
      _
    $region11: #{tpu_custom_call.1} parent=1 // pred_check_branch
      %28 = sbr.rel (0) target = $region13
    $region12: #{tpu_custom_call.1} parent=1 // pred_region
      %s30 = ssub.s32 256, 256
      %31 = vsyncadd [#allocation4], %s30
      %s32 = sshll.u32 [#allocation5], 4
      %s33 = int_to_ptr.vmem [resolvable:$true] %s32
      %38 = dma.vmem_to_hbm [thread:$0]  %s33, 256, %s1, [#allocation4], 128, 128, 8
    $region13: #{tpu_custom_call.1} parent=1 // pred_fallthru
      _
    // Predicated region
    $region14: #{tpu_custom_call.1} parent=1 // pred_check
      _
    $region15: #{tpu_custom_call.1} parent=1 // pred_check_branch
      %40 = sbr.rel (0) target = $region17
    $region16: #{tpu_custom_call.1} parent=1 // pred_region
      %41 = dma.done [#allocation4], 256
    $region17: #{tpu_custom_call.1} parent=1 // pred_fallthru
      _
    %42 = vsyncpa [#allocation3], 1
    %43 = vsyncpa [#allocation4], 1

</llo_original>
